<compile_context>
chip_gen: v5e
topology: v5e:2x2
jax: 0.10.0
libtpu: 0.0.40
codegen_flags: <defaults>
</compile_context>

<pallas_src>
import jax
import jax.numpy as jnp
from jax.experimental import pallas as pl
from jax.experimental.pallas import tpu as pltpu

LANES = 128


def _cdiv(a, b):
    return -(-a // b)


def _round_up(x, m):
    return _cdiv(x, m) * m


def _device_kind():
    try:
        return jax.devices()[0].device_kind.lower()
    except Exception:
        return ""


# ----------------------------- kernel body ---------------------------------


def _blaschke_kernel(ha_ref, hb_ref, ra_ref, rb_ref, oa_ref, ob_ref):
    f32 = jnp.float32
    h_a = ha_ref[...].astype(f32)
    h_b = hb_ref[...].astype(f32)
    r_a = ra_ref[...].astype(f32)
    r_b = rb_ref[...].astype(f32)

    # top = h + (-r)
    top_a = h_a - r_a
    top_b = h_b - r_b

    # h * conj(r)  with conj(r) = (r_a, -r_b):
    #   real: h_a*r_a + h_b*r_b
    #   imag: h_b*r_a - h_a*r_b
    mul_a = h_a * r_a + h_b * r_b
    mul_b = h_b * r_a - h_a * r_b

    # bottom = h*conj(r) + (-1, 0)
    bot_a = mul_a - 1.0
    bot_b = mul_b

    # complex division: (top_a + i top_b) / (bot_a + i bot_b)
    denom = bot_a * bot_a + bot_b * bot_b
    inv_denom = pl.reciprocal(denom, approx=False)  # full precision
    oa_ref[...] = ((top_a * bot_a + top_b * bot_b) * inv_denom).astype(oa_ref.dtype)
    ob_ref[...] = ((top_b * bot_a - top_a * bot_b) * inv_denom).astype(ob_ref.dtype)


# ------------------------- plain-JAX math (f32) -----------------------------


def _blaschke_math_f32(h_a, h_b, r_a, r_b):
    top_a = h_a - r_a
    top_b = h_b - r_b
    mul_a = h_a * r_a + h_b * r_b
    mul_b = h_b * r_a - h_a * r_b
    bot_a = mul_a - 1.0
    bot_b = mul_b
    denom = bot_a * bot_a + bot_b * bot_b
    return ((top_a * bot_a + top_b * bot_b) / denom,
            (top_b * bot_a - top_a * bot_b) / denom)


def _blaschke_tail(h_a, h_b, r_a, r_b):
    """<128-element ragged tail, computed in plain JAX (f32 accumulate)."""
    out_dtype = h_a.dtype
    o_a, o_b = _blaschke_math_f32(
        h_a.astype(jnp.float32), h_b.astype(jnp.float32),
        r_a.astype(jnp.float32), r_b.astype(jnp.float32))
    return o_a.astype(out_dtype), o_b.astype(out_dtype)


# ----------------------------- pallas wrapper -------------------------------


def _blaschke_pallas_2d(h_a, h_b, r_a, r_b):
    """Inputs are (rows, 128) slabs of identical dtype."""
    rows = h_a.shape[0]
    dtype = h_a.dtype
    itemsize = jnp.dtype(dtype).itemsize
    # Minimum sublane rows by dtype packing (8 for 4-byte, 16 for 2-byte, ...).
    min_rows = max(8, 32 // max(itemsize, 1))

    kind = _device_kind()
    is_v5 = "v5" in kind
    is_v7 = "v7" in kind

    # ~1 MiB/buffer on v5e (16 MiB default scoped VMEM), ~2 MiB on v6e/v7x.
    target_block_bytes = (1 << 20) if is_v5 else (2 << 20)

    if rows <= min_rows:
        # Full-extent block (allowed even if < (8,128): it equals the array dims).
        block_rows = rows
    else:
        block_rows = max(min_rows, target_block_bytes // (LANES * itemsize))
        block_rows -= block_rows % min_rows
        block_rows = min(block_rows, _round_up(rows, min_rows))
        # v7x: >=4 steps so both TensorCores get >=2 steps (double-buffering);
        # single-TC parts: >=2 steps for pipelining.
        min_steps = 4 if is_v7 else 2
        if _cdiv(rows, block_rows) < min_steps and rows > min_steps * min_rows:
            block_rows = min(block_rows, _round_up(_cdiv(rows, min_steps), min_rows))

    grid_steps = _cdiv(rows, block_rows)
    block_bytes = block_rows * LANES * itemsize

    # 3-deep input buffering on v6e/v7x when it can actually help.
    in_buffers = 3 if (not is_v5 and grid_steps >= 3 and hasattr(pl, "Buffered")) else 2

    def _make_in_spec():
        if in_buffers > 2:
            try:
                return pl.BlockSpec((block_rows, LANES), lambda i: (i, 0),
                                    pipeline_mode=pl.Buffered(in_buffers))
            except TypeError:
                pass  # older API: fall back to default double-buffering
        return pl.BlockSpec((block_rows, LANES), lambda i: (i, 0))

    in_spec = _make_in_spec()
    out_spec = pl.BlockSpec((block_rows, LANES), lambda i: (i, 0))

    # 4 input streams (2- or 3-buffered) + 2 double-buffered output streams.
    footprint = (4 * in_buffers + 2 * 2) * block_bytes
    default_scoped = (16 << 20) if is_v5 else (32 << 20)
    vmem_limit = None
    if footprint + (2 << 20) > default_scoped:
        vmem_limit = min(footprint + (4 << 20), 48 << 20)

    n = rows * LANES
    cost = pl.CostEstimate(
        flops=22 * n,
        transcendentals=0,
        bytes_accessed=6 * n * itemsize,  # 4 input streams + 2 output streams
    )

    out_a, out_b = pl.pallas_call(
        _blaschke_kernel,
        out_shape=(
            jax.ShapeDtypeStruct((rows, LANES), dtype),
            jax.ShapeDtypeStruct((rows, LANES), dtype),
        ),
        grid_spec=pltpu.PrefetchScalarGridSpec(
            num_scalar_prefetch=0,
            grid=(grid_steps,),
            in_specs=[in_spec, in_spec, in_spec, in_spec],
            out_specs=[out_spec, out_spec],
        ),
        compiler_params=pltpu.CompilerParams(
            dimension_semantics=("parallel",),
            vmem_limit_bytes=vmem_limit,
        ),
        cost_estimate=cost,
    )(h_a, h_b, r_a, r_b)
    return out_a, out_b


def blaschke_mult(h, r):
    """h, r: tuples (real, imag) of arrays with identical shape/dtype."""
    h_a, h_b = h
    r_a, r_b = r
    orig_shape = h_a.shape
    dtype = h_a.dtype
    n = h_a.size
    if n == 0:
        return jnp.zeros(orig_shape, dtype), jnp.zeros(orig_shape, dtype)

    n_main = (n // LANES) * LANES
    n_tail = n - n_main

    ha_f = h_a.reshape(-1)
    hb_f = h_b.reshape(-1)
    ra_f = r_a.reshape(-1)
    rb_f = r_b.reshape(-1)

    pieces_a, pieces_b = [], []

    if n_main:
        rows = n_main // LANES

        def slab(x):
            x2 = x if n_tail == 0 else x[:n_main]
            return x2.reshape(rows, LANES)

        ma, mb = _blaschke_pallas_2d(slab(ha_f), slab(hb_f), slab(ra_f), slab(rb_f))
        pieces_a.append(ma.reshape(-1))
        pieces_b.append(mb.reshape(-1))

    if n_tail:
        ta, tb = _blaschke_tail(ha_f[n_main:], hb_f[n_main:],
                                ra_f[n_main:], rb_f[n_main:])
        pieces_a.append(ta)
        pieces_b.append(tb)

    out_a = pieces_a[0] if len(pieces_a) == 1 else jnp.concatenate(pieces_a)
    out_b = pieces_b[0] if len(pieces_b) == 1 else jnp.concatenate(pieces_b)
    return out_a.reshape(orig_shape), out_b.reshape(orig_shape)


# ------------------------------ reference -----------------------------------


def _blaschke_ref(h, r):
    """Pure-JAX reference in float32 (mirrors the PyTorch module exactly)."""
    h_a, h_b = h
    r_a, r_b = r
    return _blaschke_math_f32(
        h_a.astype(jnp.float32), h_b.astype(jnp.float32),
        r_a.astype(jnp.float32), r_b.astype(jnp.float32))


if __name__ == "__main__":
    key = jax.random.PRNGKey(0)

    def make_inputs(key, shape, dtype):
        k1, k2, k3, k4, key = jax.random.split(key, 5)
        h_a = jax.random.normal(k1, shape, dtype=jnp.float32).astype(dtype)
        h_b = jax.random.normal(k2, shape, dtype=jnp.float32).astype(dtype)
        # keep |r| modest so the denominator stays away from zero
        r_a = (0.3 * jax.random.normal(k3, shape, dtype=jnp.float32)).astype(dtype)
        r_b = (0.3 * jax.random.normal(k4, shape, dtype=jnp.float32)).astype(dtype)
        return key, (h_a, h_b), (r_a, r_b)

    # 1) Lane-aligned f32 case: 2048 elements -> (16, 128) slab, kernel-only path.
    key, h1, r1 = make_inputs(key, (2, 4, 16, 16), jnp.float32)
    oa, ob = blaschke_mult(h1, r1)
    jax.block_until_ready((oa, ob))
    ra, rb = _blaschke_ref(h1, r1)
    assert jnp.allclose(oa, ra, atol=1e-5, rtol=1e-5)
    assert jnp.allclose(ob, rb, atol=1e-5, rtol=1e-5)

    # 2) Mixed case: 264 elements -> 256 through the kernel + 8-element JAX tail.
    key, h2, r2 = make_inputs(key, (8, 33), jnp.float32)
    oa, ob = blaschke_mult(h2, r2)
    jax.block_until_ready((oa, ob))
    ra, rb = _blaschke_ref(h2, r2)
    assert jnp.allclose(oa, ra, atol=1e-5, rtol=1e-5)
    assert jnp.allclose(ob, rb, atol=1e-5, rtol=1e-5)

    # 3) Pure ragged tail (n < 128): plain-JAX path only.
    key, h3, r3 = make_inputs(key, (3, 5, 7), jnp.float32)
    oa, ob = blaschke_mult(h3, r3)
    jax.block_until_ready((oa, ob))
    ra, rb = _blaschke_ref(h3, r3)
    assert jnp.allclose(oa, ra, atol=1e-5, rtol=1e-5)
    assert jnp.allclose(ob, rb, atol=1e-5, rtol=1e-5)

    # 4) bfloat16 inputs: exercises the in-kernel f32 upcast path.
    key, h4, r4 = make_inputs(key, (2, 4, 16, 16), jnp.bfloat16)
    oa, ob = blaschke_mult(h4, r4)
    jax.block_until_ready((oa, ob))
    ra, rb = _blaschke_ref(h4, r4)
    assert jnp.allclose(oa.astype(jnp.float32), ra, atol=3e-2, rtol=3e-2)
    assert jnp.allclose(ob.astype(jnp.float32), rb, atol=3e-2, rtol=3e-2)

    print("KERNEL_OK")
</pallas_src>

<mosaic_0001>
module attributes {stable_mosaic.version = 11 : i64} {
  func.func @_blaschke_kernel(%arg0: i32, %arg1: memref<16x128xf32, #tpu.memory_space<vmem>>, %arg2: memref<16x128xf32, #tpu.memory_space<vmem>>, %arg3: memref<16x128xf32, #tpu.memory_space<vmem>>, %arg4: memref<16x128xf32, #tpu.memory_space<vmem>>, %arg5: memref<16x128xf32, #tpu.memory_space<vmem>>, %arg6: memref<16x128xf32, #tpu.memory_space<vmem>>) attributes {dimension_semantics = [#tpu.dimension_semantics<parallel>], iteration_bounds = array<i64: 1>, scalar_prefetch = 0 : i64, scratch_operands = 0 : i64, tpu.core_type = #tpu.core_type<tc>, window_params = [{transform_indices = @transform_0, window_bounds = array<i64: 16, 128>}, {transform_indices = @transform_1, window_bounds = array<i64: 16, 128>}, {transform_indices = @transform_2, window_bounds = array<i64: 16, 128>}, {transform_indices = @transform_3, window_bounds = array<i64: 16, 128>}, {transform_indices = @transform_4, window_bounds = array<i64: 16, 128>}, {transform_indices = @transform_5, window_bounds = array<i64: 16, 128>}]} {
    %c0 = arith.constant 0 : index
    %c0_0 = arith.constant 0 : index
    %0 = vector.load %arg1[%c0, %c0_0] : memref<16x128xf32, #tpu.memory_space<vmem>>, vector<16x128xf32>
    %c0_1 = arith.constant 0 : index
    %c0_2 = arith.constant 0 : index
    %1 = vector.load %arg2[%c0_1, %c0_2] : memref<16x128xf32, #tpu.memory_space<vmem>>, vector<16x128xf32>
    %c0_3 = arith.constant 0 : index
    %c0_4 = arith.constant 0 : index
    %2 = vector.load %arg3[%c0_3, %c0_4] : memref<16x128xf32, #tpu.memory_space<vmem>>, vector<16x128xf32>
    %c0_5 = arith.constant 0 : index
    %c0_6 = arith.constant 0 : index
    %3 = vector.load %arg4[%c0_5, %c0_6] : memref<16x128xf32, #tpu.memory_space<vmem>>, vector<16x128xf32>
    %4 = arith.subf %0, %2 : vector<16x128xf32>
    %5 = arith.subf %1, %3 : vector<16x128xf32>
    %6 = arith.mulf %0, %2 : vector<16x128xf32>
    %7 = arith.mulf %1, %3 : vector<16x128xf32>
    %8 = arith.addf %6, %7 : vector<16x128xf32>
    %9 = arith.mulf %1, %2 : vector<16x128xf32>
    %10 = arith.mulf %0, %3 : vector<16x128xf32>
    %11 = arith.subf %9, %10 : vector<16x128xf32>
    %cst = arith.constant 1.000000e+00 : f32
    %12 = vector.broadcast %cst : f32 to vector<16x128xf32>
    %13 = arith.subf %8, %12 : vector<16x128xf32>
    %14 = arith.mulf %13, %13 : vector<16x128xf32>
    %15 = arith.mulf %11, %11 : vector<16x128xf32>
    %16 = arith.addf %14, %15 : vector<16x128xf32>
    %17 = tpu.reciprocal %16 : vector<16x128xf32> -> vector<16x128xf32>
    %18 = arith.mulf %4, %13 : vector<16x128xf32>
    %19 = arith.mulf %5, %11 : vector<16x128xf32>
    %20 = arith.addf %18, %19 : vector<16x128xf32>
    %21 = arith.mulf %20, %17 : vector<16x128xf32>
    %c0_7 = arith.constant 0 : index
    %c0_8 = arith.constant 0 : index
    %22 = vector.load %arg5[%c0_7, %c0_8] : memref<16x128xf32, #tpu.memory_space<vmem>>, vector<16x128xf32>
    tpu.vector_store %arg5[%c0_7, %c0_8], %21 {strides = array<i32>} : memref<16x128xf32, #tpu.memory_space<vmem>>, vector<16x128xf32>,
    %23 = arith.mulf %5, %13 : vector<16x128xf32>
    %24 = arith.mulf %4, %11 : vector<16x128xf32>
    %25 = arith.subf %23, %24 : vector<16x128xf32>
    %26 = arith.mulf %25, %17 : vector<16x128xf32>
    %c0_9 = arith.constant 0 : index
    %c0_10 = arith.constant 0 : index
    %27 = vector.load %arg6[%c0_9, %c0_10] : memref<16x128xf32, #tpu.memory_space<vmem>>, vector<16x128xf32>
    tpu.vector_store %arg6[%c0_9, %c0_10], %26 {strides = array<i32>} : memref<16x128xf32, #tpu.memory_space<vmem>>, vector<16x128xf32>,
    return
  }
  func.func @transform_0(%arg0: i32) -> (i32, i32) {
    %c0_i32 = arith.constant 0 : i32
    %c0_i32_0 = arith.constant 0 : i32
    return %arg0, %c0_i32 : i32, i32
  }
  func.func @transform_1(%arg0: i32) -> (i32, i32) {
    %c0_i32 = arith.constant 0 : i32
    %c0_i32_0 = arith.constant 0 : i32
    return %arg0, %c0_i32 : i32, i32
  }
  func.func @transform_2(%arg0: i32) -> (i32, i32) {
    %c0_i32 = arith.constant 0 : i32
    %c0_i32_0 = arith.constant 0 : i32
    return %arg0, %c0_i32 : i32, i32
  }
  func.func @transform_3(%arg0: i32) -> (i32, i32) {
    %c0_i32 = arith.constant 0 : i32
    %c0_i32_0 = arith.constant 0 : i32
    return %arg0, %c0_i32 : i32, i32
  }
  func.func @transform_4(%arg0: i32) -> (i32, i32) {
    %c0_i32 = arith.constant 0 : i32
    %c0_i32_0 = arith.constant 0 : i32
    return %arg0, %c0_i32 : i32, i32
  }
  func.func @transform_5(%arg0: i32) -> (i32, i32) {
    %c0_i32 = arith.constant 0 : i32
    %c0_i32_0 = arith.constant 0 : i32
    return %arg0, %c0_i32 : i32, i32
  }
}

</mosaic_0001>

<llo_original>
// kernel: tpu_custom_call.1
$region0: #{tpu_custom_call.1}
  #allocation0 [shape = 'u32[]', space=smem, size = 0x4, offset = 0x4, fixed_abs, tag = 'smem constant byte address 0x4 - core index']
  #allocation1 [shape = 'u32[72,128]{1,0:T(1,128)}', space=vmem, size = 0x9000, scoped, tag = 'internal scratch']
  %s0 = inlined_call_operand.hbm [shape: f32[16,128], index: 0, kind: input, shape index: {}]
  %s1 = inlined_call_operand.hbm [shape: f32[16,128], index: 1, kind: input, shape index: {}]
  %s2 = inlined_call_operand.hbm [shape: f32[16,128], index: 2, kind: input, shape index: {}]
  %s3 = inlined_call_operand.hbm [shape: f32[16,128], index: 3, kind: input, shape index: {}]
  %s4 = inlined_call_operand.hbm [shape: f32[16,128], index: 4, kind: output, shape index: {0}]
  %s5 = inlined_call_operand.hbm [shape: f32[16,128], index: 5, kind: output, shape index: {1}]
  %6 = xla_tuple %s4, %s5
  %s7 = sld [smem:[#allocation0]]
  $region50: #{tpu_custom_call.1} parent=0
    _
  %s9 = ssub.s32 1, %s7
  %s10 = scalar_select 0, %s9, %s7
  $region1: #{tpu_custom_call.1} parent=0
    #allocation2 [shape = 'u8[8192]{0}', space=vmem, size = 0x2000, scoped, tag = 'input window, operand 0, single buffered']
    #allocation3 [shape = 's32[1]{0}', space=sflag, size = 0x4, scoped, tag = 'scoped memory for tpu_custom_call.1']
    #allocation4 [shape = 's32[1]{0}', space=sflag, size = 0x4, scoped, tag = 'scoped memory for tpu_custom_call.1']
    #allocation5 [shape = 'u8[8192]{0}', space=vmem, size = 0x2000, scoped, tag = 'input window, operand 1, single buffered']
    #allocation6 [shape = 's32[1]{0}', space=sflag, size = 0x4, scoped, tag = 'scoped memory for tpu_custom_call.1']
    #allocation7 [shape = 'u8[8192]{0}', space=vmem, size = 0x2000, scoped, tag = 'input window, operand 2, single buffered']
    #allocation8 [shape = 'u8[8192]{0}', space=vmem, size = 0x2000, scoped, tag = 'input window, operand 3, single buffered']
    #allocation9 [shape = 's32[1]{0}', space=sflag, size = 0x4, scoped, tag = 'scoped memory for tpu_custom_call.1']
    #allocation10 [shape = 'u8[8192]{0}', space=vmem, size = 0x2000, scoped, tag = 'output window, operand 0, single buffered']
    #allocation11 [shape = 'u8[8192]{0}', space=vmem, size = 0x2000, scoped, tag = 'output window, operand 1, single buffered']
    #allocation12 [shape = 's32[1]{0}', space=sflag, size = 0x4, scoped, tag = 'scoped memory for tpu_custom_call.1']
    %11 = vsyncpa [#allocation3], 0
    %12 = vsyncpa [#allocation6], 0
    %13 = vsyncpa [#allocation9], 0
    %14 = vsyncpa [#allocation4], 0
    %15 = vsyncpa [#allocation12], 0
    // Predicated region
    $region2: #{tpu_custom_call.1} parent=1 // pred_check
      _
    $region3: #{tpu_custom_call.1} parent=1 // pred_check_branch
      %17 = sbr.rel (0) target = $region5
    $region4: #{tpu_custom_call.1} parent=1 // pred_region
      %19 = vsyncadd [#allocation3], 0
      %s20 = sshll.u32 %s0, 4
      %s21 = int_to_ptr.hbm [resolvable:$true] %s20
      %s22 = sshll.u32 [#allocation2], 4
      %s23 = int_to_ptr.vmem [resolvable:$true] %s22
      %28 = dma.hbm_to_vmem [thread:$0]  %s21, 256, %s23, [#allocation3], 128, 128, 8
    $region5: #{tpu_custom_call.1} parent=1 // pred_fallthru
      _
    // Predicated region
    $region6: #{tpu_custom_call.1} parent=1 // pred_check
      _
    $region7: #{tpu_custom_call.1} parent=1 // pred_check_branch
      %30 = sbr.rel (0) target = $region9
    $region8: #{tpu_custom_call.1} parent=1 // pred_region
      %32 = vsyncadd [#allocation6], 0
      %s33 = sshll.u32 %s1, 4
      %s34 = int_to_ptr.hbm [resolvable:$true] %s33
      %s35 = sshll.u32 [#allocation5], 4
      %s36 = int_to_ptr.vmem [resolvable:$true] %s35
      %41 = dma.hbm_to_vmem [thread:$0]  %s34, 256, %s36, [#allocation6], 128, 128, 8
    $region9: #{tpu_custom_call.1} parent=1 // pred_fallthru
      _
    // Predicated region
    $region10: #{tpu_custom_call.1} parent=1 // pred_check
      _
    $region11: #{tpu_custom_call.1} parent=1 // pred_check_branch
      %43 = sbr.rel (0) target = $region13
    $region12: #{tpu_custom_call.1} parent=1 // pred_region
      %45 = vsyncadd [#allocation6], 0
      %s46 = sshll.u32 %s2, 4
      %s47 = int_to_ptr.hbm [resolvable:$true] %s46
      %s48 = sshll.u32 [#allocation7], 4
      %s49 = int_to_ptr.vmem [resolvable:$true] %s48
      %54 = dma.hbm_to_vmem [thread:$0]  %s47, 256, %s49, [#allocation6], 128, 128, 8
    $region13: #{tpu_custom_call.1} parent=1 // pred_fallthru
      _
    // Predicated region
    $region14: #{tpu_custom_call.1} parent=1 // pred_check
      _
    $region15: #{tpu_custom_call.1} parent=1 // pred_check_branch
      %56 = sbr.rel (0) target = $region17
    $region16: #{tpu_custom_call.1} parent=1 // pred_region
      %58 = vsyncadd [#allocation9], 0
      %s59 = sshll.u32 %s3, 4
      %s60 = int_to_ptr.hbm [resolvable:$true] %s59
      %s61 = sshll.u32 [#allocation8], 4
      %s62 = int_to_ptr.vmem [resolvable:$true] %s61
      %67 = dma.hbm_to_vmem [thread:$0]  %s60, 256, %s62, [#allocation9], 128, 128, 8
    $region17: #{tpu_custom_call.1} parent=1 // pred_fallthru
      _
    // Predicated region
    $region18: #{tpu_custom_call.1} parent=1 // pred_check
      _
    $region19: #{tpu_custom_call.1} parent=1 // pred_check_branch
      %69 = sbr.rel (0) target = $region21
    $region20: #{tpu_custom_call.1} parent=1 // pred_region
      %71 = dma.done [#allocation3], 256
    $region21: #{tpu_custom_call.1} parent=1 // pred_fallthru
      _
    // Predicated region
    $region22: #{tpu_custom_call.1} parent=1 // pred_check
      _
    $region23: #{tpu_custom_call.1} parent=1 // pred_check_branch
      %73 = sbr.rel (0) target = $region25
    $region24: #{tpu_custom_call.1} parent=1 // pred_region
      %75 = dma.done [#allocation6], 256
    $region25: #{tpu_custom_call.1} parent=1 // pred_fallthru
      _
    // Predicated region
    $region26: #{tpu_custom_call.1} parent=1 // pred_check
      _
    $region27: #{tpu_custom_call.1} parent=1 // pred_check_branch
      %77 = sbr.rel (0) target = $region29
    $region28: #{tpu_custom_call.1} parent=1 // pred_region
      %79 = dma.done [#allocation6], 256
    $region29: #{tpu_custom_call.1} parent=1 // pred_fallthru
      _
    // Predicated region
    $region30: #{tpu_custom_call.1} parent=1 // pred_check
      _
    $region31: #{tpu_custom_call.1} parent=1 // pred_check_branch
      %81 = sbr.rel (0) target = $region33
    $region32: #{tpu_custom_call.1} parent=1 // pred_region
      %83 = dma.done [#allocation9], 256
    $region33: #{tpu_custom_call.1} parent=1 // pred_fallthru
      _
    %v84 = vld [vmem:[#allocation2] sm:$0xff]
    %v85 = vld [vmem:[#allocation2 + $0x8] sm:$0xff]
    %v86 = vld [vmem:[#allocation5] sm:$0xff]
    %v87 = vld [vmem:[#allocation5 + $0x8] sm:$0xff]
    %v88 = vld [vmem:[#allocation7] sm:$0xff]
    %v89 = vld [vmem:[#allocation7 + $0x8] sm:$0xff]
    %v90 = vld [vmem:[#allocation8] sm:$0xff]
    %v91 = vld [vmem:[#allocation8 + $0x8] sm:$0xff]
    %v92 = vsub.f32 %v84, %v88
    %v93 = vsub.f32 %v85, %v89
    %v94 = vsub.f32 %v86, %v90
    %v95 = vsub.f32 %v87, %v91
    %v96 = vmul.f32 %v84, %v88
    %v97 = vmul.f32 %v85, %v89
    %v98 = vmul.f32 %v86, %v90
    %v99 = vmul.f32 %v87, %v91
    %v100 = vadd.f32 %v96, %v98
    %v101 = vadd.f32 %v97, %v99
    %v102 = vmul.f32 %v86, %v88
    %v103 = vmul.f32 %v87, %v89
    %v104 = vmul.f32 %v84, %v90
    %v105 = vmul.f32 %v85, %v91
    %v106 = vsub.f32 %v102, %v104
    %v107 = vsub.f32 %v103, %v105
    %v108 = vsub.f32 %v100, 1.0
    %v109 = vsub.f32 %v101, 1.0
    %v110 = vmul.f32 %v108, %v108
    %v111 = vmul.f32 %v109, %v109
    %v112 = vmul.f32 %v106, %v106
    %v113 = vmul.f32 %v107, %v107
    %v114 = vadd.f32 %v110, %v112
    %v115 = vadd.f32 %v111, %v113
    %v116 = vrcp.pop %v114
    %v117 = vmul.f32 %v114, %v116
    %v118 = vsub.f32 1.0, %v117
    %v119 = vmul.f32 %v116, %v118
    %v120 = vadd.f32 %v116, %v119
    %vm121 = vweird.f32 %v114
    %vm122 = vweird.f32 %v116
    %vm123 = vmor %vm121, %vm122
    %v124 = vsel %vm123, %v116, %v120
    %v125 = vand.u32 2147483647, %v114
    %vm126 = vcmp.eq.f32.partialorder %v125, 8.507059e+37
    %v127 = vand.u32 %v114, 2147483648
    %v128 = vor.u32 1.1754944e-38, %v127
    %v129 = vsel %vm126, %v128, %v124
    %v130 = vrcp.pop %v115
    %v131 = vmul.f32 %v115, %v130
    %v132 = vsub.f32 1.0, %v131
    %v133 = vmul.f32 %v130, %v132
    %v134 = vadd.f32 %v130, %v133
    %vm135 = vweird.f32 %v115
    %vm136 = vweird.f32 %v130
    %vm137 = vmor %vm135, %vm136
    %v138 = vsel %vm137, %v130, %v134
    %v139 = vand.u32 2147483647, %v115
    %vm140 = vcmp.eq.f32.partialorder %v139, 8.507059e+37
    %v141 = vand.u32 %v115, 2147483648
    %v142 = vor.u32 1.1754944e-38, %v141
    %v143 = vsel %vm140, %v142, %v138
    %v144 = vmul.f32 %v92, %v108
    %v145 = vmul.f32 %v93, %v109
    %v146 = vmul.f32 %v94, %v106
    %v147 = vmul.f32 %v95, %v107
    %v148 = vadd.f32 %v144, %v146
    %v149 = vadd.f32 %v145, %v147
    %v150 = vmul.f32 %v148, %v129
    %v151 = vmul.f32 %v149, %v143
    %152 = vst [vmem:[#allocation10] sm:$0xff] %v150
    %153 = vst [vmem:[#allocation10 + $0x8] sm:$0xff] %v151
    %v154 = vmul.f32 %v94, %v108
    %v155 = vmul.f32 %v95, %v109
    %v156 = vmul.f32 %v92, %v106
    %v157 = vmul.f32 %v93, %v107
    %v158 = vsub.f32 %v154, %v156
    %v159 = vsub.f32 %v155, %v157
    %v160 = vmul.f32 %v158, %v129
    %v161 = vmul.f32 %v159, %v143
    %162 = vst [vmem:[#allocation11] sm:$0xff] %v160
    %163 = vst [vmem:[#allocation11 + $0x8] sm:$0xff] %v161
    // Predicated region
    $region34: #{tpu_custom_call.1} parent=1 // pred_check
      _
    $region35: #{tpu_custom_call.1} parent=1 // pred_check_branch
      %165 = sbr.rel (0) target = $region37
    $region36: #{tpu_custom_call.1} parent=1 // pred_region
      %167 = vsyncadd [#allocation4], 0
      %s168 = sshll.u32 [#allocation10], 4
      %s169 = int_to_ptr.vmem [resolvable:$true] %s168
      %s170 = sshll.u32 %s4, 4
      %s171 = int_to_ptr.hbm [resolvable:$true] %s170
      %176 = dma.vmem_to_hbm [thread:$0]  %s169, 256, %s171, [#allocation4], 128, 128, 8
    $region37: #{tpu_custom_call.1} parent=1 // pred_fallthru
      _
    // Predicated region
    $region38: #{tpu_custom_call.1} parent=1 // pred_check
      _
    $region39: #{tpu_custom_call.1} parent=1 // pred_check_branch
      %178 = sbr.rel (0) target = $region41
    $region40: #{tpu_custom_call.1} parent=1 // pred_region
      %180 = vsyncadd [#allocation12], 0
      %s181 = sshll.u32 [#allocation11], 4
      %s182 = int_to_ptr.vmem [resolvable:$true] %s181
      %s183 = sshll.u32 %s5, 4
      %s184 = int_to_ptr.hbm [resolvable:$true] %s183
      %189 = dma.vmem_to_hbm [thread:$0]  %s182, 256, %s184, [#allocation12], 128, 128, 8
    $region41: #{tpu_custom_call.1} parent=1 // pred_fallthru
      _
    // Predicated region
    $region42: #{tpu_custom_call.1} parent=1 // pred_check
      _
    $region43: #{tpu_custom_call.1} parent=1 // pred_check_branch
      %191 = sbr.rel (0) target = $region45
    $region44: #{tpu_custom_call.1} parent=1 // pred_region
      %193 = dma.done [#allocation4], 256
    $region45: #{tpu_custom_call.1} parent=1 // pred_fallthru
      _
    // Predicated region
    $region46: #{tpu_custom_call.1} parent=1 // pred_check
      _
    $region47: #{tpu_custom_call.1} parent=1 // pred_check_branch
      %195 = sbr.rel (0) target = $region49
    $region48: #{tpu_custom_call.1} parent=1 // pred_region
      %197 = dma.done [#allocation12], 256
    $region49: #{tpu_custom_call.1} parent=1 // pred_fallthru
      _
    %198 = vsyncpa [#allocation3], 1
    %199 = vsyncpa [#allocation6], 1
    %200 = vsyncpa [#allocation9], 1
    %201 = vsyncpa [#allocation4], 1
    %202 = vsyncpa [#allocation12], 1

</llo_original>
